<compile_context>
chip_gen: v6e
topology: v6e:2x2x1
jax: 0.10.0
libtpu: 0.0.40
codegen_flags: <defaults>
</compile_context>

<pallas_src>
import jax
import jax.numpy as jnp
from jax import lax
from jax.experimental import pallas as pl
from jax.experimental.pallas import tpu as pltpu


ROW_TILE = 256  # rows of `other` per grid step: multiple of 8 sublanes, full 512-lane last dim


def fused_linear_add_kernel(x1_ref, w_ref, b_ref, other_ref, o_ref):
    # x1_ref:    (1, K)        input row
    # w_ref:     (N, K)        Linear weight (PyTorch layout)
    # b_ref:     (1, N)        Linear bias
    # other_ref: (row_tile, N) current tile of the broadcast addend
    # o_ref:     (row_tile, N) current output tile
    k = x1_ref.shape[1]
    # Sublane-broadcast the single input row to a full 8-sublane operand so the
    # MXU sees a tile-shaped lhs; the 8x redundant work is ~1M MACs, free next
    # to the 1 MiB tile DMA.
    x_rows = jnp.broadcast_to(x1_ref[...], (8, k))
    y = lax.dot_general(
        x_rows, w_ref[...],
        dimension_numbers=(((1,), (1,)), ((), ())),   # contract K vs K: x1 @ W^T, no W.T copy
        preferred_element_type=jnp.float32,
    )[0:1, :] + b_ref[...]                            # (1, N)
    o_ref[...] = other_ref[...] + y                   # broadcast over rows, lane-dense store


def model_forward(x1, w, b, other):
    """Pallas equivalent of: torch.nn.Linear(256, 512)(x1) + other."""
    in_f = x1.shape[1]
    out_f = w.shape[0]
    R, N = other.shape

    b2d = b.reshape(1, out_f)

    row_tile = min(ROW_TILE, R)
    grid = (pl.cdiv(R, row_tile),)

    # Advisory cost: per-step redundant 8xK x KxN matmul + the broadcast add,
    # ~2.5 MiB of f32 HBM traffic total.
    cost = pl.CostEstimate(
        flops=grid[0] * 2 * 8 * in_f * out_f + R * N,
        transcendentals=0,
        bytes_accessed=(x1.size + w.size + b2d.size + other.size + R * N) * 4,
    )

    return pl.pallas_call(
        fused_linear_add_kernel,
        out_shape=jax.ShapeDtypeStruct((R, N), jnp.float32),
        grid=grid,
        in_specs=[
            pl.BlockSpec((1, in_f), lambda i: (0, 0)),       # x1: VMEM-resident
            pl.BlockSpec((out_f, in_f), lambda i: (0, 0)),   # W:  VMEM-resident, 512 KiB
            pl.BlockSpec((1, out_f), lambda i: (0, 0)),      # b
            pl.BlockSpec((row_tile, N), lambda i: (i, 0)),   # row tile of `other`
        ],
        out_specs=pl.BlockSpec((row_tile, N), lambda i: (i, 0)),
        compiler_params=pltpu.CompilerParams(
            dimension_semantics=("parallel",),               # shards the 2 steps across v7x TCs
        ),
        cost_estimate=cost,
    )(x1, w, b2d, other)


if __name__ == "__main__":
    key = jax.random.PRNGKey(0)
    k_x, k_w, k_b, k_o = jax.random.split(key, 4)

    in_features, out_features = 256, 512

    # Deterministic synthetic parameters / inputs matching the module shapes.
    x1 = jax.random.normal(k_x, (1, in_features), dtype=jnp.float32)
    w = jax.random.normal(k_w, (out_features, in_features), dtype=jnp.float32) * (
        1.0 / jnp.sqrt(in_features)
    )
    b = jax.random.normal(k_b, (out_features,), dtype=jnp.float32) * 0.01
    other = jax.random.normal(k_o, (out_features, out_features), dtype=jnp.float32)

    out = model_forward(x1, w, b, other)
    out = jax.block_until_ready(out)

    # Sanity check against plain-JAX reference of the PyTorch forward.
    # Tolerance is set loosely enough to cover MXU matmul-precision differences
    # (possible bf16-pass contraction on either side) for this K=256 dot.
    ref = (x1 @ w.T + b) + other
    assert out.shape == (out_features, out_features)
    assert out.dtype == jnp.float32
    assert jnp.allclose(out, ref, atol=1e-2, rtol=1e-2), float(jnp.max(jnp.abs(out - ref)))

    print("KERNEL_OK")
</pallas_src>

<mosaic_0001>
module attributes {stable_mosaic.version = 11 : i64} {
  func.func @fused_linear_add_kernel(%arg0: i32, %arg1: memref<1x256xf32, #tpu.memory_space<vmem>>, %arg2: memref<512x256xf32, #tpu.memory_space<vmem>>, %arg3: memref<1x512xf32, #tpu.memory_space<vmem>>, %arg4: memref<256x512xf32, #tpu.memory_space<vmem>>, %arg5: memref<256x512xf32, #tpu.memory_space<vmem>>) attributes {dimension_semantics = [#tpu.dimension_semantics<parallel>], iteration_bounds = array<i64: 2>, scalar_prefetch = 0 : i64, scratch_operands = 0 : i64, tpu.core_type = #tpu.core_type<tc>, window_params = [{pipeline_mode = #tpu.pipeline_mode<synchronous>, transform_indices = @transform_0, window_bounds = array<i64: 1, 256>}, {pipeline_mode = #tpu.pipeline_mode<synchronous>, transform_indices = @transform_1, window_bounds = array<i64: 512, 256>}, {pipeline_mode = #tpu.pipeline_mode<synchronous>, transform_indices = @transform_2, window_bounds = array<i64: 1, 512>}, {transform_indices = @transform_3, window_bounds = array<i64: 256, 512>}, {transform_indices = @transform_4, window_bounds = array<i64: 256, 512>}]} {
    %c0 = arith.constant 0 : index
    %c0_0 = arith.constant 0 : index
    %0 = vector.load %arg1[%c0, %c0_0] : memref<1x256xf32, #tpu.memory_space<vmem>>, vector<1x256xf32>
    %1 = vector.shape_cast %0 : vector<1x256xf32> to vector<1x256xf32>
    %2 = vector.broadcast %1 : vector<1x256xf32> to vector<8x256xf32>
    %c0_1 = arith.constant 0 : index
    %c0_2 = arith.constant 0 : index
    %3 = vector.load %arg2[%c0_1, %c0_2] : memref<512x256xf32, #tpu.memory_space<vmem>>, vector<512x256xf32>
    %cst = arith.constant dense<0.000000e+00> : vector<8x512xf32>
    %4 = tpu.matmul %2, %3, %cst {dimension_numbers = #tpu.dot_dimension_numbers<[1], [1], [0], [0], [0, 0, 1, 0], [], []>} : vector<8x256xf32>, vector<512x256xf32>, vector<8x512xf32> -> vector<8x512xf32>
    %5 = vector.extract_strided_slice %4 {offsets = [0, 0], sizes = [1, 512], strides = [1, 1]} : vector<8x512xf32> to vector<1x512xf32>
    %c0_3 = arith.constant 0 : index
    %c0_4 = arith.constant 0 : index
    %6 = vector.load %arg3[%c0_3, %c0_4] : memref<1x512xf32, #tpu.memory_space<vmem>>, vector<1x512xf32>
    %7 = arith.addf %5, %6 : vector<1x512xf32>
    %c0_5 = arith.constant 0 : index
    %c0_6 = arith.constant 0 : index
    %8 = vector.load %arg4[%c0_5, %c0_6] : memref<256x512xf32, #tpu.memory_space<vmem>>, vector<256x512xf32>
    %9 = vector.broadcast %7 : vector<1x512xf32> to vector<256x512xf32>
    %10 = arith.addf %8, %9 : vector<256x512xf32>
    %c0_7 = arith.constant 0 : index
    %c0_8 = arith.constant 0 : index
    %11 = vector.load %arg5[%c0_7, %c0_8] : memref<256x512xf32, #tpu.memory_space<vmem>>, vector<256x512xf32>
    tpu.vector_store %arg5[%c0_7, %c0_8], %10 {strides = array<i32>} : memref<256x512xf32, #tpu.memory_space<vmem>>, vector<256x512xf32>,
    return
  }
  func.func @transform_0(%arg0: i32) -> (i32, i32) {
    %c0_i32 = arith.constant 0 : i32
    %c0_i32_0 = arith.constant 0 : i32
    %c0_i32_1 = arith.constant 0 : i32
    return %c0_i32, %c0_i32_0 : i32, i32
  }
  func.func @transform_1(%arg0: i32) -> (i32, i32) {
    %c0_i32 = arith.constant 0 : i32
    %c0_i32_0 = arith.constant 0 : i32
    %c0_i32_1 = arith.constant 0 : i32
    return %c0_i32, %c0_i32_0 : i32, i32
  }
  func.func @transform_2(%arg0: i32) -> (i32, i32) {
    %c0_i32 = arith.constant 0 : i32
    %c0_i32_0 = arith.constant 0 : i32
    %c0_i32_1 = arith.constant 0 : i32
    return %c0_i32, %c0_i32_0 : i32, i32
  }
  func.func @transform_3(%arg0: i32) -> (i32, i32) {
    %c0_i32 = arith.constant 0 : i32
    %c0_i32_0 = arith.constant 0 : i32
    return %arg0, %c0_i32 : i32, i32
  }
  func.func @transform_4(%arg0: i32) -> (i32, i32) {
    %c0_i32 = arith.constant 0 : i32
    %c0_i32_0 = arith.constant 0 : i32
    return %arg0, %c0_i32 : i32, i32
  }
}

</mosaic_0001>

<llo_original>
// kernel: tpu_custom_call.1
$region0: #{tpu_custom_call.1}
  #allocation0 [shape = 'u32[]', space=smem, size = 0x4, offset = 0x4, fixed_abs, tag = 'smem constant byte address 0x4 - core index']
  #allocation1 [shape = 'u32[144,128]{1,0:T(1,128)}', space=vmem, size = 0x12000, scoped, tag = 'internal scratch']
  %s0 = inlined_call_operand.hbm [shape: f32[1,256], index: 0, kind: input, shape index: {}]
  %s1 = inlined_call_operand.hbm [shape: f32[512,256], index: 1, kind: input, shape index: {}]
  %s2 = inlined_call_operand.hbm [shape: f32[1,512], index: 2, kind: input, shape index: {}]
  %s3 = inlined_call_operand.hbm [shape: f32[512,512], index: 3, kind: input, shape index: {}]
  %s4 = inlined_call_operand.hbm [shape: f32[512,512], index: 4, kind: output, shape index: {}]
  %s5 = sld [smem:[#allocation0]]
  $region65: #{tpu_custom_call.1} parent=0
    _
  %s7 = ssub.s32 1, %s5
  %s8 = scalar_select 0, %s7, %s5
  $region1: #{tpu_custom_call.1} parent=0
    #allocation2 [shape = 'u8[1024]{0}', space=vmem, size = 0x400, scoped, tag = 'input window, operand 0, single buffered']
    #allocation3 [shape = 's32[2]{0}', space=sflag, size = 0x8, scoped, tag = 'scoped memory for tpu_custom_call.1']
    #allocation4 [shape = 's32[2]{0}', space=sflag, size = 0x8, scoped, tag = 'scoped memory for tpu_custom_call.1']
    #allocation5 [shape = 'u8[524288]{0}', space=vmem, size = 0x80000, scoped, tag = 'input window, operand 1, single buffered']
    #allocation6 [shape = 's32[1]{0}', space=sflag, size = 0x4, scoped, tag = 'scoped memory for tpu_custom_call.1']
    #allocation7 [shape = 'u8[2048]{0}', space=vmem, size = 0x800, scoped, tag = 'input window, operand 2, single buffered']
    #allocation8 [shape = 'u8[1048576]{0}', space=vmem, size = 0x100000, scoped, tag = 'input window, operand 3']
    #allocation9 [shape = 's32[2]{0}', space=sflag, size = 0x8, scoped, tag = 'scoped memory for tpu_custom_call.1']
    #allocation10 [shape = 'u8[1048576]{0}', space=vmem, size = 0x100000, scoped, tag = 'output window, operand 0']
    %9 = vsyncpa [#allocation3], 0
    %10 = vsyncpa [#allocation6], 0
    %11 = vsyncpa [#allocation9], 0
    %s12 = scalar_lea.sflag [#allocation9], 1
    %13 = vsyncpa %s12, 0
    %14 = vsyncpa [#allocation4], 0
    %s15 = scalar_lea.sflag [#allocation4], 1
    %16 = vsyncpa %s15, 0
    loop: start=0, step=1, limit=4
    $region2: #{tpu_custom_call.1} parent=1 // loop_pre_header
      _
    $region3: #{tpu_custom_call.1} parent=1 // loop_header
      %s18 = sphi 0, %s22
      %p19 = scmp.ge.s32.totalorder %s18, 4
      %s26 = sphi 0, %s26
      %s28 = sphi 0, %s26
      %s29 = sphi 0, %s28
      %s43 = sphi 0, %s29
      %s47 = sphi 0, %s47
      %s49 = sphi 0, %s47
      %s50 = sphi 0, %s49
      %s64 = sphi 0, %s50
      %s68 = sphi 0, %s68
      %s70 = sphi 0, %s68
      %s71 = sphi 0, %s70
      %s85 = sphi 0, %s71
      %s91 = sphi 0, %s93
      %s94 = sphi 0, %s91
      %s95 = sphi 0, %s94
      %s111 = sphi 0, %s95
      %s117 = sphi 0, %s119
      %s120 = sphi 0, %s117
      %s121 = sphi 0, %s120
      %s137 = sphi 0, %s121
    $region4: #{tpu_custom_call.1} parent=1 // loop_header_branch
      %21 = sbr.rel (%p19) target = $region8
    $region5: #{tpu_custom_call.1} parent=1 // loop_body
      %s23 = ssub.s32 %s18, 1
      %s24 = ssub.s32 %s18, 2
      %s25 = sadd.s32 %s18, 1
      %s27 = sadd.s32 %s26, 1
      %p30 = scmp.eq.s32.totalorder %s18, 1
      %p31 = scmp.ne.s32.totalorder %s26, %s28
      %p32 = scmp.eq.s32.totalorder %s18, 0
      %p33 = por %p31, %p32
      %p34 = scmp.ne.s32.totalorder %s26, %s28
      %p35 = scmp.eq.s32.totalorder %s23, 1
      %p36 = por %p34, %p35
      %p37 = scmp.ne.s32.totalorder %s28, %s29
      %p38 = scmp.eq.s32.totalorder %s23, 0
      %p39 = por %p37, %p38
      %p40 = scmp.ne.s32.totalorder %s28, %s29
      %p41 = scmp.eq.s32.totalorder %s24, 1
      %p42 = por %p40, %p41
      %p44 = scmp.ne.s32.totalorder %s29, %s43
      %p45 = scmp.eq.s32.totalorder %s24, 0
      %p46 = por %p44, %p45
      %s48 = sadd.s32 %s47, 1
      %p51 = scmp.eq.s32.totalorder %s18, 1
      %p52 = scmp.ne.s32.totalorder %s47, %s49
      %p53 = scmp.eq.s32.totalorder %s18, 0
      %p54 = por %p52, %p53
      %p55 = scmp.ne.s32.totalorder %s47, %s49
      %p56 = scmp.eq.s32.totalorder %s23, 1
      %p57 = por %p55, %p56
      %p58 = scmp.ne.s32.totalorder %s49, %s50
      %p59 = scmp.eq.s32.totalorder %s23, 0
      %p60 = por %p58, %p59
      %p61 = scmp.ne.s32.totalorder %s49, %s50
      %p62 = scmp.eq.s32.totalorder %s24, 1
      %p63 = por %p61, %p62
      %p65 = scmp.ne.s32.totalorder %s50, %s64
      %p66 = scmp.eq.s32.totalorder %s24, 0
      %p67 = por %p65, %p66
      %s69 = sadd.s32 %s68, 1
      %p72 = scmp.eq.s32.totalorder %s18, 1
      %p73 = scmp.ne.s32.totalorder %s68, %s70
      %p74 = scmp.eq.s32.totalorder %s18, 0
      %p75 = por %p73, %p74
      %p76 = scmp.ne.s32.totalorder %s68, %s70
      %p77 = scmp.eq.s32.totalorder %s23, 1
      %p78 = por %p76, %p77
      %p79 = scmp.ne.s32.totalorder %s70, %s71
      %p80 = scmp.eq.s32.totalorder %s23, 0
      %p81 = por %p79, %p80
      %p82 = scmp.ne.s32.totalorder %s70, %s71
      %p83 = scmp.eq.s32.totalorder %s24, 1
      %p84 = por %p82, %p83
      %p86 = scmp.ne.s32.totalorder %s71, %s85
      %p87 = scmp.eq.s32.totalorder %s24, 0
      %p88 = por %p86, %p87
      %s89 = ssub.s32 %s18, %s25
      %p90 = scmp.eq.s32.totalorder %s89, 0
      %s92 = sadd.s32 %s91, 1
      %s93 = scalar_select %p90, %s91, %s92
      %p96 = pneg %p90
      %p97 = scmp.eq.s32.totalorder %s18, 1
      %p98 = por %p96, %p97
      %p99 = scmp.ne.s32.totalorder %s91, %s94
      %p100 = scmp.eq.s32.totalorder %s18, 0
      %p101 = por %p99, %p100
      %p102 = scmp.ne.s32.totalorder %s91, %s94
      %p103 = scmp.eq.s32.totalorder %s23, 1
      %p104 = por %p102, %p103
      %p105 = scmp.ne.s32.totalorder %s94, %s95
      %p106 = scmp.eq.s32.totalorder %s23, 0
      %p107 = por %p105, %p106
      %p108 = scmp.ne.s32.totalorder %s94, %s95
      %p109 = scmp.eq.s32.totalorder %s24, 1
      %p110 = por %p108, %p109
      %p112 = scmp.ne.s32.totalorder %s95, %s111
      %p113 = scmp.eq.s32.totalorder %s24, 0
      %p114 = por %p112, %p113
      %s115 = ssub.s32 %s18, %s25
      %p116 = scmp.eq.s32.totalorder %s115, 0
      %s118 = sadd.s32 %s117, 1
      %s119 = scalar_select %p116, %s117, %s118
      %p122 = pneg %p116
      %p123 = scmp.eq.s32.totalorder %s18, 1
      %p124 = por %p122, %p123
      %p125 = scmp.ne.s32.totalorder %s117, %s120
      %p126 = scmp.eq.s32.totalorder %s18, 0
      %p127 = por %p125, %p126
      %p128 = scmp.ne.s32.totalorder %s117, %s120
      %p129 = scmp.eq.s32.totalorder %s23, 1
      %p130 = por %p128, %p129
      %p131 = scmp.ne.s32.totalorder %s120, %s121
      %p132 = scmp.eq.s32.totalorder %s23, 0
      %p133 = por %p131, %p132
      %p134 = scmp.ne.s32.totalorder %s120, %s121
      %p135 = scmp.eq.s32.totalorder %s24, 1
      %p136 = por %p134, %p135
      %p138 = scmp.ne.s32.totalorder %s121, %s137
      %p139 = scmp.eq.s32.totalorder %s24, 0
      %p140 = por %p138, %p139
      %p141 = scmp.le.s32.totalorder 1, %s18
      %p142 = scmp.lt.s32.totalorder %s18, 3
      %p143 = pnand %p141, %p142
      %p144 = pneg %p143
      // Predicated region
      $region9: #{tpu_custom_call.1} parent=5 // pred_check
        _
      $region10: #{tpu_custom_call.1} parent=5 // pred_check_branch
        %146 = sbr.rel (%p143) target = $region12
      $region11: #{tpu_custom_call.1} parent=5 // pred_region
        %s147 = ssub.s32 %s18, 1
        // Predicated region
        $region13: #{tpu_custom_call.1} parent=11 // pred_check
          %p148 = pneg %p39
        $region14: #{tpu_custom_call.1} parent=11 // pred_check_branch
          %150 = sbr.rel (%p148) target = $region16
        $region15: #{tpu_custom_call.1} parent=11 // pred_region
          %s152 = ssub.s32 32, 32
          %153 = vsyncadd [#allocation3], %s152
          %s155 = sshll.u32 [#allocation2], 4
          %s156 = int_to_ptr.vmem [resolvable:$true] %s155
          %158 = dma.hbm_to_vmem [thread:$0]  %s0, 32, %s156, [#allocation3]
        $region16: #{tpu_custom_call.1} parent=11 // pred_fallthru
          _
        // Predicated region
        $region17: #{tpu_custom_call.1} parent=11 // pred_check
          %p159 = pneg %p60
        $region18: #{tpu_custom_call.1} parent=11 // pred_check_branch
          %161 = sbr.rel (%p159) target = $region20
        $region19: #{tpu_custom_call.1} parent=11 // pred_region
          %s163 = ssub.s32 16384, 16384
          %164 = vsyncadd [#allocation6], %s163
          %s165 = sshll.u32 [#allocation5], 4
          %s166 = int_to_ptr.vmem [resolvable:$true] %s165
          %171 = dma.hbm_to_vmem [thread:$0]  %s1, 16384, %s166, [#allocation6], 256, 256, 16
        $region20: #{tpu_custom_call.1} parent=11 // pred_fallthru
          _
        // Predicated region
        $region21: #{tpu_custom_call.1} parent=11 // pred_check
          %p172 = pneg %p81
        $region22: #{tpu_custom_call.1} parent=11 // pred_check_branch
          %174 = sbr.rel (%p172) target = $region24
        $region23: #{tpu_custom_call.1} parent=11 // pred_region
          %s176 = ssub.s32 64, 64
          %177 = vsyncadd [#allocation6], %s176
          %s179 = sshll.u32 [#allocation7], 4
          %s180 = int_to_ptr.vmem [resolvable:$true] %s179
          %182 = dma.hbm_to_vmem [thread:$0]  %s2, 64, %s180, [#allocation6]
        $region24: #{tpu_custom_call.1} parent=11 // pred_fallthru
          _
      $region12: #{tpu_custom_call.1} parent=5 // pred_fallthru
        _
      %p183 = scmp.lt.s32.totalorder %s18, 2
      // Predicated region
      $region25: #{tpu_custom_call.1} parent=5 // pred_check
        %p184 = pneg %p183
      $region26: #{tpu_custom_call.1} parent=5 // pred_check_branch
        %186 = sbr.rel (%p184) target = $region28
      $region27: #{tpu_custom_call.1} parent=5 // pred_region
        // Predicated region
        $region29: #{tpu_custom_call.1} parent=27 // pred_check
          %p187 = pneg %p101
        $region30: #{tpu_custom_call.1} parent=27 // pred_check_branch
          %189 = sbr.rel (%p187) target = $region32
        $region31: #{tpu_custom_call.1} parent=27 // pred_region
          %s190 = sand.u32 %s91, 1
          %s191 = scalar_lea.sflag [#allocation9], %s190
          %s192 = sand.u32 %s91, 1
          %s193 = smul.addr %s192, 1024
          %s194 = scalar_lea.vmem [#allocation8], %s193
          %s195 = smul.u32 32, %s18
          %s197 = ssub.s32 16384, 16384
          %198 = vsyncadd %s191, %s197
          %s199 = smul.addr %s195, 4
          %s200 = smul.addr %s199, 128
          %s201 = scalar_lea.hbm %s3, %s200
          %s202 = sshll.u32 %s194, 4
          %s203 = int_to_ptr.vmem [resolvable:$true] %s202
          %208 = dma.hbm_to_vmem [thread:$0]  %s201, 16384, %s203, %s191, 512, 512, 32
        $region32: #{tpu_custom_call.1} parent=27 // pred_fallthru
          _
      $region28: #{tpu_custom_call.1} parent=5 // pred_fallthru
        _
      %p209 = scmp.le.s32.totalorder 1, %s18
      %p210 = scmp.lt.s32.totalorder %s18, 3
      %p211 = pnand %p209, %p210
      %p212 = pneg %p211
      // Predicated region
      $region33: #{tpu_custom_call.1} parent=5 // pred_check
        _
      $region34: #{tpu_custom_call.1} parent=5 // pred_check_branch
        %214 = sbr.rel (%p211) target = $region36
      $region35: #{tpu_custom_call.1} parent=5 // pred_region
        %s215 = ssub.s32 %s18, 1
        // Predicated region
        $region37: #{tpu_custom_call.1} parent=35 // pred_check
          %p216 = pneg %p39
        $region38: #{tpu_custom_call.1} parent=35 // pred_check_branch
          %218 = sbr.rel (%p216) target = $region40
        $region39: #{tpu_custom_call.1} parent=35 // pred_region
          %219 = dma.done [#allocation3], 32
        $region40: #{tpu_custom_call.1} parent=35 // pred_fallthru
          _
        // Predicated region
        $region41: #{tpu_custom_call.1} parent=35 // pred_check
          %p220 = pneg %p60
        $region42: #{tpu_custom_call.1} parent=35 // pred_check_branch
          %222 = sbr.rel (%p220) target = $region44
        $region43: #{tpu_custom_call.1} parent=35 // pred_region
          %223 = dma.done [#allocation6], 16384
        $region44: #{tpu_custom_call.1} parent=35 // pred_fallthru
          _
        // Predicated region
        $region45: #{tpu_custom_call.1} parent=35 // pred_check
          %p224 = pneg %p81
        $region46: #{tpu_custom_call.1} parent=35 // pred_check_branch
          %226 = sbr.rel (%p224) target = $region48
        $region47: #{tpu_custom_call.1} parent=35 // pred_region
          %227 = dma.done [#allocation6], 64
        $region48: #{tpu_custom_call.1} parent=35 // pred_fallthru
          _
        %s228 = sand.u32 %s94, 1
        %s229 = scalar_lea.sflag [#allocation9], %s228
        %s230 = sand.u32 %s94, 1
        %s231 = smul.addr %s230, 1024
        %s232 = scalar_lea.vmem [#allocation8], %s231
        // Predicated region
        $region49: #{tpu_custom_call.1} parent=35 // pred_check
          %p233 = pneg %p107
        $region50: #{tpu_custom_call.1} parent=35 // pred_check_branch
          %235 = sbr.rel (%p233) target = $region52
        $region51: #{tpu_custom_call.1} parent=35 // pred_region
          %236 = dma.done %s229, 16384
        $region52: #{tpu_custom_call.1} parent=35 // pred_fallthru
          _
        %p237 = pneg %p39
        %p238 = pneg %p36
        %p239 = pneg %p60
        %p240 = pneg %p57
        %p241 = pneg %p81
        %p242 = pneg %p78
        %s243 = sand.u32 %s94, 1
        %s244 = scalar_lea.sflag [#allocation9], %s243
        %s245 = sand.u32 %s94, 1
        %s246 = smul.addr %s245, 1024
        %s247 = scalar_lea.vmem [#allocation8], %s246
        %p248 = pneg %p107
        %p249 = pneg %p104
        %p250 = pneg %p133
        %p251 = pneg %p130
        %s252 = sand.u32 %s120, 1
        %s253 = scalar_lea.sflag [#allocation4], %s252
        %s254 = sand.u32 %s120, 1
        %s255 = smul.addr %s254, 1024
        %s256 = scalar_lea.vmem [#allocation10], %s255
        %s257 = smul.u32 32, %s23
        %s258 = smul.u32 32, %s23
        %v259 = vld [vmem:[#allocation2] sm:$0x3]
        %v261 = vlaneseq
        %v262 = vshrl.u32 %v261, 7
        %v263 = vsub.s32 0, %v262
        %v264 = vrot.slane %v259, %v263
        %v265 = vlaneseq
        %v266 = vshrl.u32 %v265, 7
        %v267 = vsub.s32 1, %v266
        %v268 = vrot.slane %v259, %v267
        %v271 = vld [vmem:[#allocation5] sm:$0xff]
        %v272 = vld [vmem:[#allocation5 + $0x8] sm:$0xff]
        %v273 = vld [vmem:[#allocation5 + $0x10] sm:$0xff]
        %v274 = vld [vmem:[#allocation5 + $0x18] sm:$0xff]
        %v275 = vld [vmem:[#allocation5 + $0x20] sm:$0xff]
        %v276 = vld [vmem:[#allocation5 + $0x28] sm:$0xff]
        %v277 = vld [vmem:[#allocation5 + $0x30] sm:$0xff]
        %v278 = vld [vmem:[#allocation5 + $0x38] sm:$0xff]
        %v279 = vld [vmem:[#allocation5 + $0x40] sm:$0xff]
        %v280 = vld [vmem:[#allocation5 + $0x48] sm:$0xff]
        %v281 = vld [vmem:[#allocation5 + $0x50] sm:$0xff]
        %v282 = vld [vmem:[#allocation5 + $0x58] sm:$0xff]
        %v283 = vld [vmem:[#allocation5 + $0x60] sm:$0xff]
        %v284 = vld [vmem:[#allocation5 + $0x68] sm:$0xff]
        %v285 = vld [vmem:[#allocation5 + $0x70] sm:$0xff]
        %v286 = vld [vmem:[#allocation5 + $0x78] sm:$0xff]
        %v287 = vld [vmem:[#allocation5 + $0x80] sm:$0xff]
        %v288 = vld [vmem:[#allocation5 + $0x88] sm:$0xff]
        %v289 = vld [vmem:[#allocation5 + $0x90] sm:$0xff]
        %v290 = vld [vmem:[#allocation5 + $0x98] sm:$0xff]
        %v291 = vld [vmem:[#allocation5 + $0xa0] sm:$0xff]
        %v292 = vld [vmem:[#allocation5 + $0xa8] sm:$0xff]
        %v293 = vld [vmem:[#allocation5 + $0xb0] sm:$0xff]
        %v294 = vld [vmem:[#allocation5 + $0xb8] sm:$0xff]
        %v295 = vld [vmem:[#allocation5 + $0xc0] sm:$0xff]
        %v296 = vld [vmem:[#allocation5 + $0xc8] sm:$0xff]
        %v297 = vld [vmem:[#allocation5 + $0xd0] sm:$0xff]
        %v298 = vld [vmem:[#allocation5 + $0xd8] sm:$0xff]
        %v299 = vld [vmem:[#allocation5 + $0xe0] sm:$0xff]
        %v300 = vld [vmem:[#allocation5 + $0xe8] sm:$0xff]
        %v301 = vld [vmem:[#allocation5 + $0xf0] sm:$0xff]
        %v302 = vld [vmem:[#allocation5 + $0xf8] sm:$0xff]
        %v303 = vld [vmem:[#allocation5 + $0x100] sm:$0xff]
        %v304 = vld [vmem:[#allocation5 + $0x108] sm:$0xff]
        %v305 = vld [vmem:[#allocation5 + $0x110] sm:$0xff]
        %v306 = vld [vmem:[#allocation5 + $0x118] sm:$0xff]
        %v307 = vld [vmem:[#allocation5 + $0x120] sm:$0xff]
        %v308 = vld [vmem:[#allocation5 + $0x128] sm:$0xff]
        %v309 = vld [vmem:[#allocation5 + $0x130] sm:$0xff]
        %v310 = vld [vmem:[#allocation5 + $0x138] sm:$0xff]
        %v311 = vld [vmem:[#allocation5 + $0x140] sm:$0xff]
        %v312 = vld [vmem:[#allocation5 + $0x148] sm:$0xff]
        %v313 = vld [vmem:[#allocation5 + $0x150] sm:$0xff]
        %v314 = vld [vmem:[#allocation5 + $0x158] sm:$0xff]
        %v315 = vld [vmem:[#allocation5 + $0x160] sm:$0xff]
        %v316 = vld [vmem:[#allocation5 + $0x168] sm:$0xff]
        %v317 = vld [vmem:[#allocation5 + $0x170] sm:$0xff]
        %v318 = vld [vmem:[#allocation5 + $0x178] sm:$0xff]
        %v319 = vld [vmem:[#allocation5 + $0x180] sm:$0xff]
        %v320 = vld [vmem:[#allocation5 + $0x188] sm:$0xff]
        %v321 = vld [vmem:[#allocation5 + $0x190] sm:$0xff]
        %v322 = vld [vmem:[#allocation5 + $0x198] sm:$0xff]
        %v323 = vld [vmem:[#allocation5 + $0x1a0] sm:$0xff]
        %v324 = vld [vmem:[#allocation5 + $0x1a8] sm:$0xff]
        %v325 = vld [vmem:[#allocation5 + $0x1b0] sm:$0xff]
        %v326 = vld [vmem:[#allocation5 + $0x1b8] sm:$0xff]
        %v327 = vld [vmem:[#allocation5 + $0x1c0] sm:$0xff]
        %v328 = vld [vmem:[#allocation5 + $0x1c8] sm:$0xff]
        %v329 = vld [vmem:[#allocation5 + $0x1d0] sm:$0xff]
        %v330 = vld [vmem:[#allocation5 + $0x1d8] sm:$0xff]
        %v331 = vld [vmem:[#allocation5 + $0x1e0] sm:$0xff]
        %v332 = vld [vmem:[#allocation5 + $0x1e8] sm:$0xff]
        %v333 = vld [vmem:[#allocation5 + $0x1f0] sm:$0xff]
        %v334 = vld [vmem:[#allocation5 + $0x1f8] sm:$0xff]
        %v335 = vld [vmem:[#allocation5 + $0x200] sm:$0xff]
        %v336 = vld [vmem:[#allocation5 + $0x208] sm:$0xff]
        %v337 = vld [vmem:[#allocation5 + $0x210] sm:$0xff]
        %v338 = vld [vmem:[#allocation5 + $0x218] sm:$0xff]
        %v339 = vld [vmem:[#allocation5 + $0x220] sm:$0xff]
        %v340 = vld [vmem:[#allocation5 + $0x228] sm:$0xff]
        %v341 = vld [vmem:[#allocation5 + $0x230] sm:$0xff]
        %v342 = vld [vmem:[#allocation5 + $0x238] sm:$0xff]
        %v343 = vld [vmem:[#allocation5 + $0x240] sm:$0xff]
        %v344 = vld [vmem:[#allocation5 + $0x248] sm:$0xff]
        %v345 = vld [vmem:[#allocation5 + $0x250] sm:$0xff]
        %v346 = vld [vmem:[#allocation5 + $0x258] sm:$0xff]
        %v347 = vld [vmem:[#allocation5 + $0x260] sm:$0xff]
        %v348 = vld [vmem:[#allocation5 + $0x268] sm:$0xff]
        %v349 = vld [vmem:[#allocation5 + $0x270] sm:$0xff]
        %v350 = vld [vmem:[#allocation5 + $0x278] sm:$0xff]
        %v351 = vld [vmem:[#allocation5 + $0x280] sm:$0xff]
        %v352 = vld [vmem:[#allocation5 + $0x288] sm:$0xff]
        %v353 = vld [vmem:[#allocation5 + $0x290] sm:$0xff]
        %v354 = vld [vmem:[#allocation5 + $0x298] sm:$0xff]
        %v355 = vld [vmem:[#allocation5 + $0x2a0] sm:$0xff]
        %v356 = vld [vmem:[#allocation5 + $0x2a8] sm:$0xff]
        %v357 = vld [vmem:[#allocation5 + $0x2b0] sm:$0xff]
        %v358 = vld [vmem:[#allocation5 + $0x2b8] sm:$0xff]
        %v359 = vld [vmem:[#allocation5 + $0x2c0] sm:$0xff]
        %v360 = vld [vmem:[#allocation5 + $0x2c8] sm:$0xff]
        %v361 = vld [vmem:[#allocation5 + $0x2d0] sm:$0xff]
        %v362 = vld [vmem:[#allocation5 + $0x2d8] sm:$0xff]
        %v363 = vld [vmem:[#allocation5 + $0x2e0] sm:$0xff]
        %v364 = vld [vmem:[#allocation5 + $0x2e8] sm:$0xff]
        %v365 = vld [vmem:[#allocation5 + $0x2f0] sm:$0xff]
        %v366 = vld [vmem:[#allocation5 + $0x2f8] sm:$0xff]
        %v367 = vld [vmem:[#allocation5 + $0x300] sm:$0xff]
        %v368 = vld [vmem:[#allocation5 + $0x308] sm:$0xff]
        %v369 = vld [vmem:[#allocation5 + $0x310] sm:$0xff]
        %v370 = vld [vmem:[#allocation5 + $0x318] sm:$0xff]
        %v371 = vld [vmem:[#allocation5 + $0x320] sm:$0xff]
        %v372 = vld [vmem:[#allocation5 + $0x328] sm:$0xff]
        %v373 = vld [vmem:[#allocation5 + $0x330] sm:$0xff]
        %v374 = vld [vmem:[#allocation5 + $0x338] sm:$0xff]
        %v375 = vld [vmem:[#allocation5 + $0x340] sm:$0xff]
        %v376 = vld [vmem:[#allocation5 + $0x348] sm:$0xff]
        %v377 = vld [vmem:[#allocation5 + $0x350] sm:$0xff]
        %v378 = vld [vmem:[#allocation5 + $0x358] sm:$0xff]
        %v379 = vld [vmem:[#allocation5 + $0x360] sm:$0xff]
        %v380 = vld [vmem:[#allocation5 + $0x368] sm:$0xff]
        %v381 = vld [vmem:[#allocation5 + $0x370] sm:$0xff]
        %v382 = vld [vmem:[#allocation5 + $0x378] sm:$0xff]
        %v383 = vld [vmem:[#allocation5 + $0x380] sm:$0xff]
        %v384 = vld [vmem:[#allocation5 + $0x388] sm:$0xff]
        %v385 = vld [vmem:[#allocation5 + $0x390] sm:$0xff]
        %v386 = vld [vmem:[#allocation5 + $0x398] sm:$0xff]
        %v387 = vld [vmem:[#allocation5 + $0x3a0] sm:$0xff]
        %v388 = vld [vmem:[#allocation5 + $0x3a8] sm:$0xff]
        %v389 = vld [vmem:[#allocation5 + $0x3b0] sm:$0xff]
        %v390 = vld [vmem:[#allocation5 + $0x3b8] sm:$0xff]
        %v391 = vld [vmem:[#allocation5 + $0x3c0] sm:$0xff]
        %v392 = vld [vmem:[#allocation5 + $0x3c8] sm:$0xff]
        %v393 = vld [vmem:[#allocation5 + $0x3d0] sm:$0xff]
        %v394 = vld [vmem:[#allocation5 + $0x3d8] sm:$0xff]
        %v395 = vld [vmem:[#allocation5 + $0x3e0] sm:$0xff]
        %v396 = vld [vmem:[#allocation5 + $0x3e8] sm:$0xff]
        %v397 = vld [vmem:[#allocation5 + $0x3f0] sm:$0xff]
        %v398 = vld [vmem:[#allocation5 + $0x3f8] sm:$0xff]
        %399 = vmatprep.subr.mxu0 %v302
        %400 = vmatpush1.xpose.msra.mxu0 %v301
        %401 = vmatprep.subr.mxu0 %v300
        %402 = vmatpush1.xpose.msra.mxu0 %v299
        %403 = vmatprep.subr.mxu0 %v298
        %404 = vmatpush1.xpose.msra.mxu0 %v297
        %405 = vmatprep.subr.mxu0 %v296
        %406 = vmatpush1.xpose.msra.mxu0 %v295
        %407 = vmatprep.subr.mxu0 %v294
        %408 = vmatpush1.xpose.msra.mxu0 %v293
        %409 = vmatprep.subr.mxu0 %v292
        %410 = vmatpush1.xpose.msra.mxu0 %v291
        %411 = vmatprep.subr.mxu0 %v290
        %412 = vmatpush1.xpose.msra.mxu0 %v289
        %413 = vmatprep.subr.mxu0 %v288
        %414 = vmatpush1.xpose.msra.mxu0 %v287
        %415 = vmatprep.subr.mxu0 %v286
        %416 = vmatpush1.xpose.msra.mxu0 %v285
        %417 = vmatprep.subr.mxu0 %v284
        %418 = vmatpush1.xpose.msra.mxu0 %v283
        %419 = vmatprep.subr.mxu0 %v282
        %420 = vmatpush1.xpose.msra.mxu0 %v281
        %421 = vmatprep.subr.mxu0 %v280
        %422 = vmatpush1.xpose.msra.mxu0 %v279
        %423 = vmatprep.subr.mxu0 %v278
        %424 = vmatpush1.xpose.msra.mxu0 %v277
        %425 = vmatprep.subr.mxu0 %v276
        %426 = vmatpush1.xpose.msra.mxu0 %v275
        %427 = vmatprep.subr.mxu0 %v274
        %428 = vmatpush1.xpose.msra.mxu0 %v273
        %429 = vmatprep.subr.mxu0 %v272
        %430 = vmatpush1.xpose.msra.mxu0 %v271
        %431 = vmatprep.subr.mxu0 %v334
        %432 = vmatpush2.xpose.msra.mxu0 %v333
        %433 = vmatprep.subr.mxu0 %v332
        %434 = vmatpush2.xpose.msra.mxu0 %v331
        %435 = vmatprep.subr.mxu0 %v330
        %436 = vmatpush2.xpose.msra.mxu0 %v329
        %437 = vmatprep.subr.mxu0 %v328
        %438 = vmatpush2.xpose.msra.mxu0 %v327
        %439 = vmatprep.subr.mxu0 %v326
        %440 = vmatpush2.xpose.msra.mxu0 %v325
        %441 = vmatprep.subr.mxu0 %v324
        %442 = vmatpush2.xpose.msra.mxu0 %v323
        %443 = vmatprep.subr.mxu0 %v322
        %444 = vmatpush2.xpose.msra.mxu0 %v321
        %445 = vmatprep.subr.mxu0 %v320
        %446 = vmatpush2.xpose.msra.mxu0 %v319
        %447 = vmatprep.subr.mxu0 %v318
        %448 = vmatpush2.xpose.msra.mxu0 %v317
        %449 = vmatprep.subr.mxu0 %v316
        %450 = vmatpush2.xpose.msra.mxu0 %v315
        %451 = vmatprep.subr.mxu0 %v314
        %452 = vmatpush2.xpose.msra.mxu0 %v313
        %453 = vmatprep.subr.mxu0 %v312
        %454 = vmatpush2.xpose.msra.mxu0 %v311
        %455 = vmatprep.subr.mxu0 %v310
        %456 = vmatpush2.xpose.msra.mxu0 %v309
        %457 = vmatprep.subr.mxu0 %v308
        %458 = vmatpush2.xpose.msra.mxu0 %v307
        %459 = vmatprep.subr.mxu0 %v306
        %460 = vmatpush2.xpose.msra.mxu0 %v305
        %461 = vmatprep.subr.mxu0 %v304
        %462 = vmatpush2.xpose.msra.mxu0 %v303
        %463 = vmatprep.mubr.f32.mxu0 %v268
        %464 = vmatmul.mubr.f32.gmra.mxu0 %v264
        %v465 = vpop.f32.mrf.mxu0
        %v466 = vadd.f32 0.0, %v465
        %v467 = vpop.f32.mrf.mxu0
        %v468 = vadd.f32 0.0, %v467
        %469 = vdwg.mxu0
        %470 = vmatprep.subr.mxu0 %v366
        %471 = vmatpush1.xpose.msra.mxu0 %v365
        %472 = vmatprep.subr.mxu0 %v364
        %473 = vmatpush1.xpose.msra.mxu0 %v363
        %474 = vmatprep.subr.mxu0 %v362
        %475 = vmatpush1.xpose.msra.mxu0 %v361
        %476 = vmatprep.subr.mxu0 %v360
        %477 = vmatpush1.xpose.msra.mxu0 %v359
        %478 = vmatprep.subr.mxu0 %v358
        %479 = vmatpush1.xpose.msra.mxu0 %v357
        %480 = vmatprep.subr.mxu0 %v356
        %481 = vmatpush1.xpose.msra.mxu0 %v355
        %482 = vmatprep.subr.mxu0 %v354
        %483 = vmatpush1.xpose.msra.mxu0 %v353
        %484 = vmatprep.subr.mxu0 %v352
        %485 = vmatpush1.xpose.msra.mxu0 %v351
        %486 = vmatprep.subr.mxu0 %v350
        %487 = vmatpush1.xpose.msra.mxu0 %v349
        %488 = vmatprep.subr.mxu0 %v348
        %489 = vmatpush1.xpose.msra.mxu0 %v347
        %490 = vmatprep.subr.mxu0 %v346
        %491 = vmatpush1.xpose.msra.mxu0 %v345
        %492 = vmatprep.subr.mxu0 %v344
        %493 = vmatpush1.xpose.msra.mxu0 %v343
        %494 = vmatprep.subr.mxu0 %v342
        %495 = vmatpush1.xpose.msra.mxu0 %v341
        %496 = vmatprep.subr.mxu0 %v340
        %497 = vmatpush1.xpose.msra.mxu0 %v339
        %498 = vmatprep.subr.mxu0 %v338
        %499 = vmatpush1.xpose.msra.mxu0 %v337
        %500 = vmatprep.subr.mxu0 %v336
        %501 = vmatpush1.xpose.msra.mxu0 %v335
        %502 = vmatprep.subr.mxu0 %v398
        %503 = vmatpush2.xpose.msra.mxu0 %v397
        %504 = vmatprep.subr.mxu0 %v396
        %505 = vmatpush2.xpose.msra.mxu0 %v395
        %506 = vmatprep.subr.mxu0 %v394
        %507 = vmatpush2.xpose.msra.mxu0 %v393
        %508 = vmatprep.subr.mxu0 %v392
        %509 = vmatpush2.xpose.msra.mxu0 %v391
        %510 = vmatprep.subr.mxu0 %v390
        %511 = vmatpush2.xpose.msra.mxu0 %v389
        %512 = vmatprep.subr.mxu0 %v388
        %513 = vmatpush2.xpose.msra.mxu0 %v387
        %514 = vmatprep.subr.mxu0 %v386
        %515 = vmatpush2.xpose.msra.mxu0 %v385
        %516 = vmatprep.subr.mxu0 %v384
        %517 = vmatpush2.xpose.msra.mxu0 %v383
        %518 = vmatprep.subr.mxu0 %v382
        %519 = vmatpush2.xpose.msra.mxu0 %v381
        %520 = vmatprep.subr.mxu0 %v380
        %521 = vmatpush2.xpose.msra.mxu0 %v379
        %522 = vmatprep.subr.mxu0 %v378
        %523 = vmatpush2.xpose.msra.mxu0 %v377
        %524 = vmatprep.subr.mxu0 %v376
        %525 = vmatpush2.xpose.msra.mxu0 %v375
        %526 = vmatprep.subr.mxu0 %v374
        %527 = vmatpush2.xpose.msra.mxu0 %v373
        %528 = vmatprep.subr.mxu0 %v372
        %529 = vmatpush2.xpose.msra.mxu0 %v371
        %530 = vmatprep.subr.mxu0 %v370
        %531 = vmatpush2.xpose.msra.mxu0 %v369
        %532 = vmatprep.subr.mxu0 %v368
        %533 = vmatpush2.xpose.msra.mxu0 %v367
        %534 = vmatprep.mubr.f32.mxu0 %v268
        %535 = vmatmul.mubr.f32.gmra.mxu0 %v264
        %v536 = vpop.f32.mrf.mxu0
        %v537 = vadd.f32 0.0, %v536
        %v538 = vpop.f32.mrf.mxu0
        %v539 = vadd.f32 0.0, %v538
        %540 = vdwg.mxu0
        %v541 = vld [vmem:[#allocation7] sm:$0xf]
        %v543 = vlaneseq
        %v544 = vshrl.u32 %v543, 7
        %v545 = vsub.s32 0, %v544
        %v546 = vrot.slane %v541, %v545
        %v547 = vlaneseq
        %v548 = vshrl.u32 %v547, 7
        %v549 = vsub.s32 1, %v548
        %v550 = vrot.slane %v541, %v549
        %v551 = vlaneseq
        %v552 = vshrl.u32 %v551, 7
        %v553 = vsub.s32 2, %v552
        %v554 = vrot.slane %v541, %v553
        %v555 = vlaneseq
        %v556 = vshrl.u32 %v555, 7
        %v557 = vsub.s32 3, %v556
        %v558 = vrot.slane %v541, %v557
        %v563 = vadd.f32 %v466, %v546
        %v564 = vadd.f32 %v468, %v550
        %v565 = vadd.f32 %v537, %v554
        %v566 = vadd.f32 %v539, %v558
        %v567 = vld [vmem:[%s232] sm:$0xff]
        %v568 = vld [vmem:[%s232 + $0x8] sm:$0xff]
        %v569 = vld [vmem:[%s232 + $0x10] sm:$0xff]
        %v570 = vld [vmem:[%s232 + $0x18] sm:$0xff]
        %v571 = vld [vmem:[%s232 + $0x20] sm:$0xff]
        %v572 = vld [vmem:[%s232 + $0x28] sm:$0xff]
        %v573 = vld [vmem:[%s232 + $0x30] sm:$0xff]
        %v574 = vld [vmem:[%s232 + $0x38] sm:$0xff]
        %v575 = vld [vmem:[%s232 + $0x40] sm:$0xff]
        %v576 = vld [vmem:[%s232 + $0x48] sm:$0xff]
        %v577 = vld [vmem:[%s232 + $0x50] sm:$0xff]
        %v578 = vld [vmem:[%s232 + $0x58] sm:$0xff]
        %v579 = vld [vmem:[%s232 + $0x60] sm:$0xff]
        %v580 = vld [vmem:[%s232 + $0x68] sm:$0xff]
        %v581 = vld [vmem:[%s232 + $0x70] sm:$0xff]
        %v582 = vld [vmem:[%s232 + $0x78] sm:$0xff]
        %v583 = vld [vmem:[%s232 + $0x80] sm:$0xff]
        %v584 = vld [vmem:[%s232 + $0x88] sm:$0xff]
        %v585 = vld [vmem:[%s232 + $0x90] sm:$0xff]
        %v586 = vld [vmem:[%s232 + $0x98] sm:$0xff]
        %v587 = vld [vmem:[%s232 + $0xa0] sm:$0xff]
        %v588 = vld [vmem:[%s232 + $0xa8] sm:$0xff]
        %v589 = vld [vmem:[%s232 + $0xb0] sm:$0xff]
        %v590 = vld [vmem:[%s232 + $0xb8] sm:$0xff]
        %v591 = vld [vmem:[%s232 + $0xc0] sm:$0xff]
        %v592 = vld [vmem:[%s232 + $0xc8] sm:$0xff]
        %v593 = vld [vmem:[%s232 + $0xd0] sm:$0xff]
        %v594 = vld [vmem:[%s232 + $0xd8] sm:$0xff]
        %v595 = vld [vmem:[%s232 + $0xe0] sm:$0xff]
        %v596 = vld [vmem:[%s232 + $0xe8] sm:$0xff]
        %v597 = vld [vmem:[%s232 + $0xf0] sm:$0xff]
        %v598 = vld [vmem:[%s232 + $0xf8] sm:$0xff]
        %v599 = vld [vmem:[%s232 + $0x100] sm:$0xff]
        %v600 = vld [vmem:[%s232 + $0x108] sm:$0xff]
        %v601 = vld [vmem:[%s232 + $0x110] sm:$0xff]
        %v602 = vld [vmem:[%s232 + $0x118] sm:$0xff]
        %v603 = vld [vmem:[%s232 + $0x120] sm:$0xff]
        %v604 = vld [vmem:[%s232 + $0x128] sm:$0xff]
        %v605 = vld [vmem:[%s232 + $0x130] sm:$0xff]
        %v606 = vld [vmem:[%s232 + $0x138] sm:$0xff]
        %v607 = vld [vmem:[%s232 + $0x140] sm:$0xff]
        %v608 = vld [vmem:[%s232 + $0x148] sm:$0xff]
        %v609 = vld [vmem:[%s232 + $0x150] sm:$0xff]
        %v610 = vld [vmem:[%s232 + $0x158] sm:$0xff]
        %v611 = vld [vmem:[%s232 + $0x160] sm:$0xff]
        %v612 = vld [vmem:[%s232 + $0x168] sm:$0xff]
        %v613 = vld [vmem:[%s232 + $0x170] sm:$0xff]
        %v614 = vld [vmem:[%s232 + $0x178] sm:$0xff]
        %v615 = vld [vmem:[%s232 + $0x180] sm:$0xff]
        %v616 = vld [vmem:[%s232 + $0x188] sm:$0xff]
        %v617 = vld [vmem:[%s232 + $0x190] sm:$0xff]
        %v618 = vld [vmem:[%s232 + $0x198] sm:$0xff]
        %v619 = vld [vmem:[%s232 + $0x1a0] sm:$0xff]
        %v620 = vld [vmem:[%s232 + $0x1a8] sm:$0xff]
        %v621 = vld [vmem:[%s232 + $0x1b0] sm:$0xff]
        %v622 = vld [vmem:[%s232 + $0x1b8] sm:$0xff]
        %v623 = vld [vmem:[%s232 + $0x1c0] sm:$0xff]
        %v624 = vld [vmem:[%s232 + $0x1c8] sm:$0xff]
        %v625 = vld [vmem:[%s232 + $0x1d0] sm:$0xff]
        %v626 = vld [vmem:[%s232 + $0x1d8] sm:$0xff]
        %v627 = vld [vmem:[%s232 + $0x1e0] sm:$0xff]
        %v628 = vld [vmem:[%s232 + $0x1e8] sm:$0xff]
        %v629 = vld [vmem:[%s232 + $0x1f0] sm:$0xff]
        %v630 = vld [vmem:[%s232 + $0x1f8] sm:$0xff]
        %v631 = vld [vmem:[%s232 + $0x200] sm:$0xff]
        %v632 = vld [vmem:[%s232 + $0x208] sm:$0xff]
        %v633 = vld [vmem:[%s232 + $0x210] sm:$0xff]
        %v634 = vld [vmem:[%s232 + $0x218] sm:$0xff]
        %v635 = vld [vmem:[%s232 + $0x220] sm:$0xff]
        %v636 = vld [vmem:[%s232 + $0x228] sm:$0xff]
        %v637 = vld [vmem:[%s232 + $0x230] sm:$0xff]
        %v638 = vld [vmem:[%s232 + $0x238] sm:$0xff]
        %v639 = vld [vmem:[%s232 + $0x240] sm:$0xff]
        %v640 = vld [vmem:[%s232 + $0x248] sm:$0xff]
        %v641 = vld [vmem:[%s232 + $0x250] sm:$0xff]
        %v642 = vld [vmem:[%s232 + $0x258] sm:$0xff]
        %v643 = vld [vmem:[%s232 + $0x260] sm:$0xff]
        %v644 = vld [vmem:[%s232 + $0x268] sm:$0xff]
        %v645 = vld [vmem:[%s232 + $0x270] sm:$0xff]
        %v646 = vld [vmem:[%s232 + $0x278] sm:$0xff]
        %v647 = vld [vmem:[%s232 + $0x280] sm:$0xff]
        %v648 = vld [vmem:[%s232 + $0x288] sm:$0xff]
        %v649 = vld [vmem:[%s232 + $0x290] sm:$0xff]
        %v650 = vld [vmem:[%s232 + $0x298] sm:$0xff]
        %v651 = vld [vmem:[%s232 + $0x2a0] sm:$0xff]
        %v652 = vld [vmem:[%s232 + $0x2a8] sm:$0xff]
        %v653 = vld [vmem:[%s232 + $0x2b0] sm:$0xff]
        %v654 = vld [vmem:[%s232 + $0x2b8] sm:$0xff]
        %v655 = vld [vmem:[%s232 + $0x2c0] sm:$0xff]
        %v656 = vld [vmem:[%s232 + $0x2c8] sm:$0xff]
        %v657 = vld [vmem:[%s232 + $0x2d0] sm:$0xff]
        %v658 = vld [vmem:[%s232 + $0x2d8] sm:$0xff]
        %v659 = vld [vmem:[%s232 + $0x2e0] sm:$0xff]
        %v660 = vld [vmem:[%s232 + $0x2e8] sm:$0xff]
        %v661 = vld [vmem:[%s232 + $0x2f0] sm:$0xff]
        %v662 = vld [vmem:[%s232 + $0x2f8] sm:$0xff]
        %v663 = vld [vmem:[%s232 + $0x300] sm:$0xff]
        %v664 = vld [vmem:[%s232 + $0x308] sm:$0xff]
        %v665 = vld [vmem:[%s232 + $0x310] sm:$0xff]
        %v666 = vld [vmem:[%s232 + $0x318] sm:$0xff]
        %v667 = vld [vmem:[%s232 + $0x320] sm:$0xff]
        %v668 = vld [vmem:[%s232 + $0x328] sm:$0xff]
        %v669 = vld [vmem:[%s232 + $0x330] sm:$0xff]
        %v670 = vld [vmem:[%s232 + $0x338] sm:$0xff]
        %v671 = vld [vmem:[%s232 + $0x340] sm:$0xff]
        %v672 = vld [vmem:[%s232 + $0x348] sm:$0xff]
        %v673 = vld [vmem:[%s232 + $0x350] sm:$0xff]
        %v674 = vld [vmem:[%s232 + $0x358] sm:$0xff]
        %v675 = vld [vmem:[%s232 + $0x360] sm:$0xff]
        %v676 = vld [vmem:[%s232 + $0x368] sm:$0xff]
        %v677 = vld [vmem:[%s232 + $0x370] sm:$0xff]
        %v678 = vld [vmem:[%s232 + $0x378] sm:$0xff]
        %v679 = vld [vmem:[%s232 + $0x380] sm:$0xff]
        %v680 = vld [vmem:[%s232 + $0x388] sm:$0xff]
        %v681 = vld [vmem:[%s232 + $0x390] sm:$0xff]
        %v682 = vld [vmem:[%s232 + $0x398] sm:$0xff]
        %v683 = vld [vmem:[%s232 + $0x3a0] sm:$0xff]
        %v684 = vld [vmem:[%s232 + $0x3a8] sm:$0xff]
        %v685 = vld [vmem:[%s232 + $0x3b0] sm:$0xff]
        %v686 = vld [vmem:[%s232 + $0x3b8] sm:$0xff]
        %v687 = vld [vmem:[%s232 + $0x3c0] sm:$0xff]
        %v688 = vld [vmem:[%s232 + $0x3c8] sm:$0xff]
        %v689 = vld [vmem:[%s232 + $0x3d0] sm:$0xff]
        %v690 = vld [vmem:[%s232 + $0x3d8] sm:$0xff]
        %v691 = vld [vmem:[%s232 + $0x3e0] sm:$0xff]
        %v692 = vld [vmem:[%s232 + $0x3e8] sm:$0xff]
        %v693 = vld [vmem:[%s232 + $0x3f0] sm:$0xff]
        %v694 = vld [vmem:[%s232 + $0x3f8] sm:$0xff]
        %v695 = vlaneseq
        %v696 = vshrl.u32 %v695, 7
        %v697 = vsub.s32 0, %v696
        %v698 = vrot.slane %v563, %v697
        %v699 = vlaneseq
        %v700 = vshrl.u32 %v699, 7
        %v701 = vsub.s32 0, %v700
        %v702 = vrot.slane %v564, %v701
        %v703 = vlaneseq
        %v704 = vshrl.u32 %v703, 7
        %v705 = vsub.s32 0, %v704
        %v706 = vrot.slane %v565, %v705
        %v707 = vlaneseq
        %v708 = vshrl.u32 %v707, 7
        %v709 = vsub.s32 0, %v708
        %v710 = vrot.slane %v566, %v709
        %v711 = vadd.f32 %v567, %v698
        %v712 = vadd.f32 %v568, %v702
        %v713 = vadd.f32 %v569, %v706
        %v714 = vadd.f32 %v570, %v710
        %v715 = vadd.f32 %v571, %v698
        %v716 = vadd.f32 %v572, %v702
        %v717 = vadd.f32 %v573, %v706
        %v718 = vadd.f32 %v574, %v710
        %v719 = vadd.f32 %v575, %v698
        %v720 = vadd.f32 %v576, %v702
        %v721 = vadd.f32 %v577, %v706
        %v722 = vadd.f32 %v578, %v710
        %v723 = vadd.f32 %v579, %v698
        %v724 = vadd.f32 %v580, %v702
        %v725 = vadd.f32 %v581, %v706
        %v726 = vadd.f32 %v582, %v710
        %v727 = vadd.f32 %v583, %v698
        %v728 = vadd.f32 %v584, %v702
        %v729 = vadd.f32 %v585, %v706
        %v730 = vadd.f32 %v586, %v710
        %v731 = vadd.f32 %v587, %v698
        %v732 = vadd.f32 %v588, %v702
        %v733 = vadd.f32 %v589, %v706
        %v734 = vadd.f32 %v590, %v710
        %v735 = vadd.f32 %v591, %v698
        %v736 = vadd.f32 %v592, %v702
        %v737 = vadd.f32 %v593, %v706
        %v738 = vadd.f32 %v594, %v710
        %v739 = vadd.f32 %v595, %v698
        %v740 = vadd.f32 %v596, %v702
        %v741 = vadd.f32 %v597, %v706
        %v742 = vadd.f32 %v598, %v710
        %v743 = vadd.f32 %v599, %v698
        %v744 = vadd.f32 %v600, %v702
        %v745 = vadd.f32 %v601, %v706
        %v746 = vadd.f32 %v602, %v710
        %v747 = vadd.f32 %v603, %v698
        %v748 = vadd.f32 %v604, %v702
        %v749 = vadd.f32 %v605, %v706
        %v750 = vadd.f32 %v606, %v710
        %v751 = vadd.f32 %v607, %v698
        %v752 = vadd.f32 %v608, %v702
        %v753 = vadd.f32 %v609, %v706
        %v754 = vadd.f32 %v610, %v710
        %v755 = vadd.f32 %v611, %v698
        %v756 = vadd.f32 %v612, %v702
        %v757 = vadd.f32 %v613, %v706
        %v758 = vadd.f32 %v614, %v710
        %v759 = vadd.f32 %v615, %v698
        %v760 = vadd.f32 %v616, %v702
        %v761 = vadd.f32 %v617, %v706
        %v762 = vadd.f32 %v618, %v710
        %v763 = vadd.f32 %v619, %v698
        %v764 = vadd.f32 %v620, %v702
        %v765 = vadd.f32 %v621, %v706
        %v766 = vadd.f32 %v622, %v710
        %v767 = vadd.f32 %v623, %v698
        %v768 = vadd.f32 %v624, %v702
        %v769 = vadd.f32 %v625, %v706
        %v770 = vadd.f32 %v626, %v710
        %v771 = vadd.f32 %v627, %v698
        %v772 = vadd.f32 %v628, %v702
        %v773 = vadd.f32 %v629, %v706
        %v774 = vadd.f32 %v630, %v710
        %v775 = vadd.f32 %v631, %v698
        %v776 = vadd.f32 %v632, %v702
        %v777 = vadd.f32 %v633, %v706
        %v778 = vadd.f32 %v634, %v710
        %v779 = vadd.f32 %v635, %v698
        %v780 = vadd.f32 %v636, %v702
        %v781 = vadd.f32 %v637, %v706
        %v782 = vadd.f32 %v638, %v710
        %v783 = vadd.f32 %v639, %v698
        %v784 = vadd.f32 %v640, %v702
        %v785 = vadd.f32 %v641, %v706
        %v786 = vadd.f32 %v642, %v710
        %v787 = vadd.f32 %v643, %v698
        %v788 = vadd.f32 %v644, %v702
        %v789 = vadd.f32 %v645, %v706
        %v790 = vadd.f32 %v646, %v710
        %v791 = vadd.f32 %v647, %v698
        %v792 = vadd.f32 %v648, %v702
        %v793 = vadd.f32 %v649, %v706
        %v794 = vadd.f32 %v650, %v710
        %v795 = vadd.f32 %v651, %v698
        %v796 = vadd.f32 %v652, %v702
        %v797 = vadd.f32 %v653, %v706
        %v798 = vadd.f32 %v654, %v710
        %v799 = vadd.f32 %v655, %v698
        %v800 = vadd.f32 %v656, %v702
        %v801 = vadd.f32 %v657, %v706
        %v802 = vadd.f32 %v658, %v710
        %v803 = vadd.f32 %v659, %v698
        %v804 = vadd.f32 %v660, %v702
        %v805 = vadd.f32 %v661, %v706
        %v806 = vadd.f32 %v662, %v710
        %v807 = vadd.f32 %v663, %v698
        %v808 = vadd.f32 %v664, %v702
        %v809 = vadd.f32 %v665, %v706
        %v810 = vadd.f32 %v666, %v710
        %v811 = vadd.f32 %v667, %v698
        %v812 = vadd.f32 %v668, %v702
        %v813 = vadd.f32 %v669, %v706
        %v814 = vadd.f32 %v670, %v710
        %v815 = vadd.f32 %v671, %v698
        %v816 = vadd.f32 %v672, %v702
        %v817 = vadd.f32 %v673, %v706
        %v818 = vadd.f32 %v674, %v710
        %v819 = vadd.f32 %v675, %v698
        %v820 = vadd.f32 %v676, %v702
        %v821 = vadd.f32 %v677, %v706
        %v822 = vadd.f32 %v678, %v710
        %v823 = vadd.f32 %v679, %v698
        %v824 = vadd.f32 %v680, %v702
        %v825 = vadd.f32 %v681, %v706
        %v826 = vadd.f32 %v682, %v710
        %v827 = vadd.f32 %v683, %v698
        %v828 = vadd.f32 %v684, %v702
        %v829 = vadd.f32 %v685, %v706
        %v830 = vadd.f32 %v686, %v710
        %v831 = vadd.f32 %v687, %v698
        %v832 = vadd.f32 %v688, %v702
        %v833 = vadd.f32 %v689, %v706
        %v834 = vadd.f32 %v690, %v710
        %v835 = vadd.f32 %v691, %v698
        %v836 = vadd.f32 %v692, %v702
        %v837 = vadd.f32 %v693, %v706
        %v838 = vadd.f32 %v694, %v710
        %839 = vst [vmem:[%s256] sm:$0xff] %v711
        %840 = vst [vmem:[%s256 + $0x8] sm:$0xff] %v712
        %841 = vst [vmem:[%s256 + $0x10] sm:$0xff] %v713
        %842 = vst [vmem:[%s256 + $0x18] sm:$0xff] %v714
        %843 = vst [vmem:[%s256 + $0x20] sm:$0xff] %v715
        %844 = vst [vmem:[%s256 + $0x28] sm:$0xff] %v716
        %845 = vst [vmem:[%s256 + $0x30] sm:$0xff] %v717
        %846 = vst [vmem:[%s256 + $0x38] sm:$0xff] %v718
        %847 = vst [vmem:[%s256 + $0x40] sm:$0xff] %v719
        %848 = vst [vmem:[%s256 + $0x48] sm:$0xff] %v720
        %849 = vst [vmem:[%s256 + $0x50] sm:$0xff] %v721
        %850 = vst [vmem:[%s256 + $0x58] sm:$0xff] %v722
        %851 = vst [vmem:[%s256 + $0x60] sm:$0xff] %v723
        %852 = vst [vmem:[%s256 + $0x68] sm:$0xff] %v724
        %853 = vst [vmem:[%s256 + $0x70] sm:$0xff] %v725
        %854 = vst [vmem:[%s256 + $0x78] sm:$0xff] %v726
        %855 = vst [vmem:[%s256 + $0x80] sm:$0xff] %v727
        %856 = vst [vmem:[%s256 + $0x88] sm:$0xff] %v728
        %857 = vst [vmem:[%s256 + $0x90] sm:$0xff] %v729
        %858 = vst [vmem:[%s256 + $0x98] sm:$0xff] %v730
        %859 = vst [vmem:[%s256 + $0xa0] sm:$0xff] %v731
        %860 = vst [vmem:[%s256 + $0xa8] sm:$0xff] %v732
        %861 = vst [vmem:[%s256 + $0xb0] sm:$0xff] %v733
        %862 = vst [vmem:[%s256 + $0xb8] sm:$0xff] %v734
        %863 = vst [vmem:[%s256 + $0xc0] sm:$0xff] %v735
        %864 = vst [vmem:[%s256 + $0xc8] sm:$0xff] %v736
        %865 = vst [vmem:[%s256 + $0xd0] sm:$0xff] %v737
        %866 = vst [vmem:[%s256 + $0xd8] sm:$0xff] %v738
        %867 = vst [vmem:[%s256 + $0xe0] sm:$0xff] %v739
        %868 = vst [vmem:[%s256 + $0xe8] sm:$0xff] %v740
        %869 = vst [vmem:[%s256 + $0xf0] sm:$0xff] %v741
        %870 = vst [vmem:[%s256 + $0xf8] sm:$0xff] %v742
        %871 = vst [vmem:[%s256 + $0x100] sm:$0xff] %v743
        %872 = vst [vmem:[%s256 + $0x108] sm:$0xff] %v744
        %873 = vst [vmem:[%s256 + $0x110] sm:$0xff] %v745
        %874 = vst [vmem:[%s256 + $0x118] sm:$0xff] %v746
        %875 = vst [vmem:[%s256 + $0x120] sm:$0xff] %v747
        %876 = vst [vmem:[%s256 + $0x128] sm:$0xff] %v748
        %877 = vst [vmem:[%s256 + $0x130] sm:$0xff] %v749
        %878 = vst [vmem:[%s256 + $0x138] sm:$0xff] %v750
        %879 = vst [vmem:[%s256 + $0x140] sm:$0xff] %v751
        %880 = vst [vmem:[%s256 + $0x148] sm:$0xff] %v752
        %881 = vst [vmem:[%s256 + $0x150] sm:$0xff] %v753
        %882 = vst [vmem:[%s256 + $0x158] sm:$0xff] %v754
        %883 = vst [vmem:[%s256 + $0x160] sm:$0xff] %v755
        %884 = vst [vmem:[%s256 + $0x168] sm:$0xff] %v756
        %885 = vst [vmem:[%s256 + $0x170] sm:$0xff] %v757
        %886 = vst [vmem:[%s256 + $0x178] sm:$0xff] %v758
        %887 = vst [vmem:[%s256 + $0x180] sm:$0xff] %v759
        %888 = vst [vmem:[%s256 + $0x188] sm:$0xff] %v760
        %889 = vst [vmem:[%s256 + $0x190] sm:$0xff] %v761
        %890 = vst [vmem:[%s256 + $0x198] sm:$0xff] %v762
        %891 = vst [vmem:[%s256 + $0x1a0] sm:$0xff] %v763
        %892 = vst [vmem:[%s256 + $0x1a8] sm:$0xff] %v764
        %893 = vst [vmem:[%s256 + $0x1b0] sm:$0xff] %v765
        %894 = vst [vmem:[%s256 + $0x1b8] sm:$0xff] %v766
        %895 = vst [vmem:[%s256 + $0x1c0] sm:$0xff] %v767
        %896 = vst [vmem:[%s256 + $0x1c8] sm:$0xff] %v768
        %897 = vst [vmem:[%s256 + $0x1d0] sm:$0xff] %v769
        %898 = vst [vmem:[%s256 + $0x1d8] sm:$0xff] %v770
        %899 = vst [vmem:[%s256 + $0x1e0] sm:$0xff] %v771
        %900 = vst [vmem:[%s256 + $0x1e8] sm:$0xff] %v772
        %901 = vst [vmem:[%s256 + $0x1f0] sm:$0xff] %v773
        %902 = vst [vmem:[%s256 + $0x1f8] sm:$0xff] %v774
        %903 = vst [vmem:[%s256 + $0x200] sm:$0xff] %v775
        %904 = vst [vmem:[%s256 + $0x208] sm:$0xff] %v776
        %905 = vst [vmem:[%s256 + $0x210] sm:$0xff] %v777
        %906 = vst [vmem:[%s256 + $0x218] sm:$0xff] %v778
        %907 = vst [vmem:[%s256 + $0x220] sm:$0xff] %v779
        %908 = vst [vmem:[%s256 + $0x228] sm:$0xff] %v780
        %909 = vst [vmem:[%s256 + $0x230] sm:$0xff] %v781
        %910 = vst [vmem:[%s256 + $0x238] sm:$0xff] %v782
        %911 = vst [vmem:[%s256 + $0x240] sm:$0xff] %v783
        %912 = vst [vmem:[%s256 + $0x248] sm:$0xff] %v784
        %913 = vst [vmem:[%s256 + $0x250] sm:$0xff] %v785
        %914 = vst [vmem:[%s256 + $0x258] sm:$0xff] %v786
        %915 = vst [vmem:[%s256 + $0x260] sm:$0xff] %v787
        %916 = vst [vmem:[%s256 + $0x268] sm:$0xff] %v788
        %917 = vst [vmem:[%s256 + $0x270] sm:$0xff] %v789
        %918 = vst [vmem:[%s256 + $0x278] sm:$0xff] %v790
        %919 = vst [vmem:[%s256 + $0x280] sm:$0xff] %v791
        %920 = vst [vmem:[%s256 + $0x288] sm:$0xff] %v792
        %921 = vst [vmem:[%s256 + $0x290] sm:$0xff] %v793
        %922 = vst [vmem:[%s256 + $0x298] sm:$0xff] %v794
        %923 = vst [vmem:[%s256 + $0x2a0] sm:$0xff] %v795
        %924 = vst [vmem:[%s256 + $0x2a8] sm:$0xff] %v796
        %925 = vst [vmem:[%s256 + $0x2b0] sm:$0xff] %v797
        %926 = vst [vmem:[%s256 + $0x2b8] sm:$0xff] %v798
        %927 = vst [vmem:[%s256 + $0x2c0] sm:$0xff] %v799
        %928 = vst [vmem:[%s256 + $0x2c8] sm:$0xff] %v800
        %929 = vst [vmem:[%s256 + $0x2d0] sm:$0xff] %v801
        %930 = vst [vmem:[%s256 + $0x2d8] sm:$0xff] %v802
        %931 = vst [vmem:[%s256 + $0x2e0] sm:$0xff] %v803
        %932 = vst [vmem:[%s256 + $0x2e8] sm:$0xff] %v804
        %933 = vst [vmem:[%s256 + $0x2f0] sm:$0xff] %v805
        %934 = vst [vmem:[%s256 + $0x2f8] sm:$0xff] %v806
        %935 = vst [vmem:[%s256 + $0x300] sm:$0xff] %v807
        %936 = vst [vmem:[%s256 + $0x308] sm:$0xff] %v808
        %937 = vst [vmem:[%s256 + $0x310] sm:$0xff] %v809
        %938 = vst [vmem:[%s256 + $0x318] sm:$0xff] %v810
        %939 = vst [vmem:[%s256 + $0x320] sm:$0xff] %v811
        %940 = vst [vmem:[%s256 + $0x328] sm:$0xff] %v812
        %941 = vst [vmem:[%s256 + $0x330] sm:$0xff] %v813
        %942 = vst [vmem:[%s256 + $0x338] sm:$0xff] %v814
        %943 = vst [vmem:[%s256 + $0x340] sm:$0xff] %v815
        %944 = vst [vmem:[%s256 + $0x348] sm:$0xff] %v816
        %945 = vst [vmem:[%s256 + $0x350] sm:$0xff] %v817
        %946 = vst [vmem:[%s256 + $0x358] sm:$0xff] %v818
        %947 = vst [vmem:[%s256 + $0x360] sm:$0xff] %v819
        %948 = vst [vmem:[%s256 + $0x368] sm:$0xff] %v820
        %949 = vst [vmem:[%s256 + $0x370] sm:$0xff] %v821
        %950 = vst [vmem:[%s256 + $0x378] sm:$0xff] %v822
        %951 = vst [vmem:[%s256 + $0x380] sm:$0xff] %v823
        %952 = vst [vmem:[%s256 + $0x388] sm:$0xff] %v824
        %953 = vst [vmem:[%s256 + $0x390] sm:$0xff] %v825
        %954 = vst [vmem:[%s256 + $0x398] sm:$0xff] %v826
        %955 = vst [vmem:[%s256 + $0x3a0] sm:$0xff] %v827
        %956 = vst [vmem:[%s256 + $0x3a8] sm:$0xff] %v828
        %957 = vst [vmem:[%s256 + $0x3b0] sm:$0xff] %v829
        %958 = vst [vmem:[%s256 + $0x3b8] sm:$0xff] %v830
        %959 = vst [vmem:[%s256 + $0x3c0] sm:$0xff] %v831
        %960 = vst [vmem:[%s256 + $0x3c8] sm:$0xff] %v832
        %961 = vst [vmem:[%s256 + $0x3d0] sm:$0xff] %v833
        %962 = vst [vmem:[%s256 + $0x3d8] sm:$0xff] %v834
        %963 = vst [vmem:[%s256 + $0x3e0] sm:$0xff] %v835
        %964 = vst [vmem:[%s256 + $0x3e8] sm:$0xff] %v836
        %965 = vst [vmem:[%s256 + $0x3f0] sm:$0xff] %v837
        %966 = vst [vmem:[%s256 + $0x3f8] sm:$0xff] %v838
        %s967 = sand.u32 %s120, 1
        %s968 = scalar_lea.sflag [#allocation4], %s967
        %s969 = sand.u32 %s120, 1
        %s970 = smul.addr %s969, 1024
        %s971 = scalar_lea.vmem [#allocation10], %s970
        // Predicated region
        $region53: #{tpu_custom_call.1} parent=35 // pred_check
          %p972 = pneg %p130
        $region54: #{tpu_custom_call.1} parent=35 // pred_check_branch
          %974 = sbr.rel (%p972) target = $region56
        $region55: #{tpu_custom_call.1} parent=35 // pred_region
          %s975 = smul.u32 32, %s23
          %s977 = ssub.s32 16384, 16384
          %978 = vsyncadd %s968, %s977
          %s979 = smul.addr %s975, 4
          %s980 = smul.addr %s979, 128
          %s981 = scalar_lea.hbm %s4, %s980
          %s982 = sshll.u32 %s971, 4
          %s983 = int_to_ptr.vmem [resolvable:$true] %s982
          %988 = dma.vmem_to_hbm [thread:$0]  %s983, 16384, %s981, %s968, 512, 512, 32
        $region56: #{tpu_custom_call.1} parent=35 // pred_fallthru
          _
      $region36: #{tpu_custom_call.1} parent=5 // pred_fallthru
        _
      %p989 = scmp.le.s32.totalorder 2, %s18
      // Predicated region
      $region57: #{tpu_custom_call.1} parent=5 // pred_check
        %p990 = pneg %p989
      $region58: #{tpu_custom_call.1} parent=5 // pred_check_branch
        %992 = sbr.rel (%p990) target = $region60
      $region59: #{tpu_custom_call.1} parent=5 // pred_region
        %s993 = ssub.s32 %s18, 2
        // Predicated region
        $region61: #{tpu_custom_call.1} parent=59 // pred_check
          %p994 = pneg %p136
        $region62: #{tpu_custom_call.1} parent=59 // pred_check_branch
          %996 = sbr.rel (%p994) target = $region64
        $region63: #{tpu_custom_call.1} parent=59 // pred_region
          %s997 = sand.u32 %s121, 1
          %s998 = scalar_lea.sflag [#allocation4], %s997
          %s999 = sand.u32 %s121, 1
          %s1000 = smul.addr %s999, 1024
          %s1001 = scalar_lea.vmem [#allocation10], %s1000
          %1002 = dma.done %s998, 16384
        $region64: #{tpu_custom_call.1} parent=59 // pred_fallthru
          _
      $region60: #{tpu_custom_call.1} parent=5 // pred_fallthru
        _
    $region6: #{tpu_custom_call.1} parent=1 // loop_footer
      %s22 = sadd.s32 1, %s18
    $region7: #{tpu_custom_call.1} parent=1 // loop_footer_branch
      %17 = sbr.rel target = $region3
    $region8: #{tpu_custom_call.1} parent=1 // loop_exit
      _
    %1003 = vsyncpa [#allocation3], 1
    %s1004 = scalar_lea.sflag [#allocation3], 1
    %1005 = vsyncpa %s1004, 1
    %1006 = vsyncpa [#allocation6], 1
    %1007 = vsyncpa [#allocation9], 1
    %s1008 = scalar_lea.sflag [#allocation9], 1
    %1009 = vsyncpa %s1008, 1
    %1010 = vsyncpa [#allocation4], 1
    %s1011 = scalar_lea.sflag [#allocation4], 1
    %1012 = vsyncpa %s1011, 1

</llo_original>
